<compile_context>
chip_gen: v6e
topology: v6e:2x2x1
jax: 0.10.0
libtpu: 0.0.40
codegen_flags: <defaults>
</compile_context>

<pallas_src>
import jax
import jax.numpy as jnp
from jax.experimental import pallas as pl
from jax.experimental.pallas import tpu as pltpu


def _round_up(x, m):
    return ((x + m - 1) // m) * m


def _vmem_capacity_bytes():
    # Generation-aware VMEM capacity (v5e/v6e: 128 MiB, v7x: 64 MiB per TC).
    # Fall back to the conservative 64 MiB if the query is unavailable.
    try:
        return int(pltpu.get_tpu_info().vmem_capacity_bytes)
    except Exception:
        return 64 * 1024 * 1024


def _vmem_limit_bytes(vmem_cap):
    # Scoped VMEM limit: 3/4 of physical capacity, capped at 100 MiB
    # (v7x -> 48 MiB, v5e/v6e -> 96 MiB), leaving headroom for internal scratch.
    return min(int(vmem_cap * 3 // 4), 100 * 1024 * 1024)


# --------------------------------------------------------------------------------------
# Stage 1: masked mean pooling (mean_pooling_sbert) + fused L2 normalization.
# --------------------------------------------------------------------------------------
def _pool_normalize_kernel(h_ref, m_ref, out_ref):
    # h_ref: (TB, S, D) token embeddings, m_ref: (TB, S) attention mask,
    # out_ref: (TB, D) L2-normalized masked-mean embeddings (bf16).
    m = m_ref[...].astype(jnp.float32)                                      # (TB, S)
    denom = jnp.maximum(jnp.sum(m, axis=1, keepdims=True), 1e-9)            # (TB, 1)
    # One EUP reciprocal per row (approx).  The per-row scale error cancels exactly
    # under the L2 normalization below, so this does not affect the logits.
    m_scaled = m * pl.reciprocal(denom, approx=True)                        # (TB, S)
    h = h_ref[...].astype(jnp.float32)                                      # (TB, S, D)
    pooled = jnp.sum(h * m_scaled[:, :, None], axis=1)                      # (TB, D) f32
    # F.normalize(p=2, dim=1) with clamp_min(||x||, 1e-12) == x * rsqrt(max(sumsq, 1e-24))
    inv = jax.lax.rsqrt(
        jnp.maximum(jnp.sum(pooled * pooled, axis=1, keepdims=True), 1e-24))
    out_ref[...] = (pooled * inv).astype(out_ref.dtype)


def _pool_normalize(hidden, mask, *, out_dtype=jnp.bfloat16):
    """hidden: [B, S, D], mask: [B, S].  Returns normalized embeddings [B, D] (bf16)."""
    b, s, d = hidden.shape
    vmem_cap = _vmem_capacity_bytes()
    # Total double-buffered block budget: ~40 MiB on 128 MiB chips, ~28 MiB on v7x.
    block_budget = min(40 * 1024 * 1024, vmem_cap // 2 - 4 * 1024 * 1024)
    single = block_budget // 2                       # per-buffer (double buffering)
    row_bytes = s * d * hidden.dtype.itemsize + s * 4 + d * 4

    if b * row_bytes <= single:
        # Whole batch in one pipelined step: no batch padding, no extra HBM pass.
        tb = b
    else:
        tb = max(8, min(b, (single // row_bytes) // 8 * 8))

    if b % tb == 0:
        bp = b
        hidden_p = hidden
        mask_p = mask.astype(jnp.float32)
    else:
        # TODO(synk): this jnp.pad materializes a copy of the full [B,S,D] activation in
        # HBM; only hit when B does not divide the chosen batch tile.
        bp = _round_up(b, tb)
        hidden_p = jnp.pad(hidden, ((0, bp - b), (0, 0), (0, 0)))
        mask_p = jnp.pad(mask.astype(jnp.float32), ((0, bp - b), (0, 0)))

    pooled = pl.pallas_call(
        _pool_normalize_kernel,
        out_shape=jax.ShapeDtypeStruct((bp, d), out_dtype),
        grid_spec=pltpu.PrefetchScalarGridSpec(
            num_scalar_prefetch=0,
            grid=(bp // tb,),
            in_specs=[
                pl.BlockSpec((tb, s, d), lambda i: (i, 0, 0)),
                pl.BlockSpec((tb, s), lambda i: (i, 0)),
            ],
            out_specs=pl.BlockSpec((tb, d), lambda i: (i, 0)),
        ),
        compiler_params=pltpu.CompilerParams(
            dimension_semantics=("parallel",),
            vmem_limit_bytes=_vmem_limit_bytes(vmem_cap),
        ),
    )(hidden_p, mask_p)
    return pooled[:b]


# --------------------------------------------------------------------------------------
# Stage 2: similarity matmul with VMEM-resident quote embeddings.
# --------------------------------------------------------------------------------------
def _logits_kernel(pn_ref, pq_ref, out_ref):
    # pn_ref: (tm, D) normalized narratives (bf16), changes per grid step.
    # pq_ref: (Bq_pad, D) normalized quotes (bf16), constant index_map -> VMEM-resident.
    # out_ref: (tm, Bq_pad) f32 logits (lane-dense last dim).
    # logits = cls_n @ cls_q^T via contraction dims (no explicit transpose),
    # bf16 operands, f32 accumulation on the MXU.
    out_ref[...] = jax.lax.dot_general(
        pn_ref[...], pq_ref[...],
        dimension_numbers=(((1,), (1,)), ((), ())),
        preferred_element_type=jnp.float32,
    )


def similarity_logits(hidden_q, mask_q, hidden_n, mask_n):
    """hidden_*: [B, S, D], mask_*: [B, S].  Returns [Bn, Bq] similarity logits (f32)."""
    pooled_q = _pool_normalize(hidden_q, mask_q)      # (Bq, D) bf16, already normalized
    pooled_n = _pool_normalize(hidden_n, mask_n)      # (Bn, D) bf16, already normalized
    bq, d = pooled_q.shape
    bn = pooled_n.shape[0]
    vmem_cap = _vmem_capacity_bytes()

    # 256-row tiles fill the 2x256x256 MXU on v6e/v7x (and are still fine on v5e).
    tm = min(256, _round_up(bn, 8))
    bn_p = _round_up(bn, tm)
    bq_p = _round_up(bq, 128)                         # lane-dense logits last dim
    pn = pooled_n if bn_p == bn else jnp.pad(pooled_n, ((0, bn_p - bn), (0, 0)))
    pq = pooled_q if bq_p == bq else jnp.pad(pooled_q, ((0, bq_p - bq), (0, 0)))
    # Zero-padded rows give zero logits and are sliced off below.

    logits = pl.pallas_call(
        _logits_kernel,
        out_shape=jax.ShapeDtypeStruct((bn_p, bq_p), jnp.float32),
        grid_spec=pltpu.PrefetchScalarGridSpec(
            num_scalar_prefetch=0,
            grid=(bn_p // tm,),
            in_specs=[
                pl.BlockSpec((tm, d), lambda i: (i, 0)),
                # Full quote matrix, constant block index -> DMA'd once, stays in VMEM.
                pl.BlockSpec((bq_p, d), lambda i: (0, 0)),
            ],
            out_specs=pl.BlockSpec((tm, bq_p), lambda i: (i, 0)),
        ),
        compiler_params=pltpu.CompilerParams(
            dimension_semantics=("parallel",),
            vmem_limit_bytes=_vmem_limit_bytes(vmem_cap),
        ),
    )(pn, pq)
    return logits[:bn, :bq]


# --------------------------------------------------------------------------------------
# Pure-JAX reference (mirrors the PyTorch sentencebert branch, f32 throughout).
# --------------------------------------------------------------------------------------
def _reference(hidden_q, mask_q, hidden_n, mask_n):
    def pool(h, m):
        m3 = m[:, :, None].astype(jnp.float32)
        p = jnp.sum(h * m3, axis=1) / jnp.maximum(jnp.sum(m3, axis=1), 1e-9)
        return p / jnp.maximum(jnp.linalg.norm(p, axis=1, keepdims=True), 1e-12)

    return pool(hidden_n, mask_n) @ pool(hidden_q, mask_q).T


if __name__ == "__main__":
    key = jax.random.PRNGKey(0)
    k1, k2 = jax.random.split(key)

    Bq, Bn, S, D = 4, 2, 8, 32  # quotes, narratives, seq len, hidden dim

    # Synthetic "encoder outputs" (deterministic) in place of the pretrained LLM.
    hidden_q = jax.random.normal(k1, (Bq, S, D), dtype=jnp.float32)
    hidden_n = jax.random.normal(k2, (Bn, S, D), dtype=jnp.float32)

    # Attention masks: first few tokens valid, rest padded (deterministic pattern).
    mask_q = (jnp.arange(S)[None, :] < jnp.array([[8], [6], [5], [7]])).astype(jnp.float32)
    mask_n = (jnp.arange(S)[None, :] < jnp.array([[8], [4]])).astype(jnp.float32)

    logits = similarity_logits(hidden_q, mask_q, hidden_n, mask_n)
    logits = jax.block_until_ready(logits)

    ref = _reference(hidden_q, mask_q, hidden_n, mask_n)
    assert logits.shape == (Bn, Bq)
    # bf16 matmul operands (f32 accumulation) -> relaxed tolerance vs the f32 reference.
    assert jnp.allclose(logits, ref, atol=2e-2, rtol=2e-2)

    print("KERNEL_OK")
</pallas_src>

<mosaic_0001>
module attributes {stable_mosaic.version = 11 : i64} {
  func.func @_pool_normalize_kernel(%arg0: i32, %arg1: memref<4x8x32xf32, #tpu.memory_space<vmem>>, %arg2: memref<4x8xf32, #tpu.memory_space<vmem>>, %arg3: memref<4x32xbf16, #tpu.memory_space<vmem>>) attributes {dimension_semantics = [#tpu.dimension_semantics<parallel>], iteration_bounds = array<i64: 1>, scalar_prefetch = 0 : i64, scratch_operands = 0 : i64, tpu.core_type = #tpu.core_type<tc>, window_params = [{transform_indices = @transform_0, window_bounds = array<i64: 4, 8, 32>}, {transform_indices = @transform_1, window_bounds = array<i64: 4, 8>}, {transform_indices = @transform_2, window_bounds = array<i64: 4, 32>}]} {
    %c0 = arith.constant 0 : index
    %c0_0 = arith.constant 0 : index
    %0 = vector.load %arg2[%c0, %c0_0] : memref<4x8xf32, #tpu.memory_space<vmem>>, vector<4x8xf32>
    %cst = arith.constant dense<0.000000e+00> : vector<4xf32>
    %1 = vector.multi_reduction <add>, %0, %cst [1] : vector<4x8xf32> to vector<4xf32>
    %2 = vector.shape_cast %1 : vector<4xf32> to vector<4x1xf32>
    %cst_1 = arith.constant 9.99999971E-10 : f32
    %3 = vector.broadcast %cst_1 : f32 to vector<4x1xf32>
    %4 = arith.maximumf %2, %3 : vector<4x1xf32>
    %5 = tpu.reciprocal %4 {approx = true} : vector<4x1xf32> -> vector<4x1xf32>
    %6 = vector.broadcast %5 : vector<4x1xf32> to vector<4x8xf32>
    %7 = arith.mulf %0, %6 : vector<4x8xf32>
    %c0_2 = arith.constant 0 : index
    %c0_3 = arith.constant 0 : index
    %c0_4 = arith.constant 0 : index
    %8 = vector.load %arg1[%c0_2, %c0_3, %c0_4] : memref<4x8x32xf32, #tpu.memory_space<vmem>>, vector<4x8x32xf32>
    %9 = vector.shape_cast %7 : vector<4x8xf32> to vector<4x8x1xf32>
    %10 = vector.broadcast %9 : vector<4x8x1xf32> to vector<4x8x32xf32>
    %11 = arith.mulf %8, %10 : vector<4x8x32xf32>
    %cst_5 = arith.constant dense<0.000000e+00> : vector<4x32xf32>
    %12 = vector.multi_reduction <add>, %11, %cst_5 [1] : vector<4x8x32xf32> to vector<4x32xf32>
    %13 = arith.mulf %12, %12 : vector<4x32xf32>
    %cst_6 = arith.constant dense<0.000000e+00> : vector<4xf32>
    %14 = vector.multi_reduction <add>, %13, %cst_6 [1] : vector<4x32xf32> to vector<4xf32>
    %15 = vector.shape_cast %14 : vector<4xf32> to vector<4x1xf32>
    %cst_7 = arith.constant 1.000000e-24 : f32
    %16 = vector.broadcast %cst_7 : f32 to vector<4x1xf32>
    %17 = arith.maximumf %15, %16 : vector<4x1xf32>
    %18 = math.rsqrt %17 : vector<4x1xf32>
    %19 = vector.broadcast %18 : vector<4x1xf32> to vector<4x32xf32>
    %20 = arith.mulf %12, %19 : vector<4x32xf32>
    %21 = arith.truncf %20 : vector<4x32xf32> to vector<4x32xbf16>
    %c0_8 = arith.constant 0 : index
    %c0_9 = arith.constant 0 : index
    %22 = vector.load %arg3[%c0_8, %c0_9] : memref<4x32xbf16, #tpu.memory_space<vmem>>, vector<4x32xbf16>
    tpu.vector_store %arg3[%c0_8, %c0_9], %21 {strides = array<i32>} : memref<4x32xbf16, #tpu.memory_space<vmem>>, vector<4x32xbf16>,
    return
  }
  func.func @transform_0(%arg0: i32) -> (i32, i32, i32) {
    %c0_i32 = arith.constant 0 : i32
    %c0_i32_0 = arith.constant 0 : i32
    %c0_i32_1 = arith.constant 0 : i32
    return %arg0, %c0_i32, %c0_i32_0 : i32, i32, i32
  }
  func.func @transform_1(%arg0: i32) -> (i32, i32) {
    %c0_i32 = arith.constant 0 : i32
    %c0_i32_0 = arith.constant 0 : i32
    return %arg0, %c0_i32 : i32, i32
  }
  func.func @transform_2(%arg0: i32) -> (i32, i32) {
    %c0_i32 = arith.constant 0 : i32
    %c0_i32_0 = arith.constant 0 : i32
    return %arg0, %c0_i32 : i32, i32
  }
}

</mosaic_0001>

<llo_original>
// kernel: tpu_custom_call.1
$region0: #{tpu_custom_call.1}
  #allocation0 [shape = 'u32[]', space=smem, size = 0x4, offset = 0x4, fixed_abs, tag = 'smem constant byte address 0x4 - core index']
  #allocation1 [shape = 'u32[144,128]{1,0:T(1,128)}', space=vmem, size = 0x12000, scoped, tag = 'internal scratch']
  %s0 = inlined_call_operand.hbm [shape: f32[4,8,32], index: 0, kind: input, shape index: {}]
  %s1 = inlined_call_operand.hbm [shape: f32[4,8], index: 1, kind: input, shape index: {}]
  %s2 = inlined_call_operand.hbm [shape: bf16[4,32], index: 2, kind: output, shape index: {}]
  %s3 = sld [smem:[#allocation0]]
  $region26: #{tpu_custom_call.1} parent=0
    _
  %s5 = ssub.s32 1, %s3
  %s6 = scalar_select 0, %s5, %s3
  $region1: #{tpu_custom_call.1} parent=0
    #allocation2 [shape = 'u8[16384]{0}', space=vmem, size = 0x4000, scoped, tag = 'input window, operand 0, single buffered']
    #allocation3 [shape = 's32[1]{0}', space=sflag, size = 0x4, scoped, tag = 'scoped memory for tpu_custom_call.1']
    #allocation4 [shape = 's32[1]{0}', space=sflag, size = 0x4, scoped, tag = 'scoped memory for tpu_custom_call.1']
    #allocation5 [shape = 'u8[2048]{0}', space=vmem, size = 0x800, scoped, tag = 'input window, operand 1, single buffered']
    #allocation6 [shape = 's32[1]{0}', space=sflag, size = 0x4, scoped, tag = 'scoped memory for tpu_custom_call.1']
    #allocation7 [shape = 'u8[1024]{0}', space=vmem, size = 0x400, scoped, tag = 'output window, operand 0, single buffered']
    %7 = vsyncpa [#allocation3], 0
    %8 = vsyncpa [#allocation6], 0
    %9 = vsyncpa [#allocation4], 0
    // Predicated region
    $region2: #{tpu_custom_call.1} parent=1 // pred_check
      _
    $region3: #{tpu_custom_call.1} parent=1 // pred_check_branch
      %11 = sbr.rel (0) target = $region5
    $region4: #{tpu_custom_call.1} parent=1 // pred_region
      %s13 = ssub.s32 512, 512
      %14 = vsyncadd [#allocation3], %s13
      %s15 = sshll.u32 [#allocation2], 4
      %s16 = int_to_ptr.vmem [resolvable:$true] %s15
      %21 = dma.hbm_to_vmem [thread:$0]  %s0, 512, %s16, [#allocation3], 128, 128, 8
    $region5: #{tpu_custom_call.1} parent=1 // pred_fallthru
      _
    // Predicated region
    $region6: #{tpu_custom_call.1} parent=1 // pred_check
      _
    $region7: #{tpu_custom_call.1} parent=1 // pred_check_branch
      %23 = sbr.rel (0) target = $region9
    $region8: #{tpu_custom_call.1} parent=1 // pred_region
      %s25 = ssub.s32 64, 64
      %26 = vsyncadd [#allocation6], %s25
      %s28 = sshll.u32 [#allocation5], 4
      %s29 = int_to_ptr.vmem [resolvable:$true] %s28
      %31 = dma.hbm_to_vmem [thread:$0]  %s1, 64, %s29, [#allocation6]
    $region9: #{tpu_custom_call.1} parent=1 // pred_fallthru
      _
    // Predicated region
    $region10: #{tpu_custom_call.1} parent=1 // pred_check
      _
    $region11: #{tpu_custom_call.1} parent=1 // pred_check_branch
      %33 = sbr.rel (0) target = $region13
    $region12: #{tpu_custom_call.1} parent=1 // pred_region
      %34 = dma.done [#allocation3], 512
    $region13: #{tpu_custom_call.1} parent=1 // pred_fallthru
      _
    // Predicated region
    $region14: #{tpu_custom_call.1} parent=1 // pred_check
      _
    $region15: #{tpu_custom_call.1} parent=1 // pred_check_branch
      %36 = sbr.rel (0) target = $region17
    $region16: #{tpu_custom_call.1} parent=1 // pred_region
      %37 = dma.done [#allocation6], 64
    $region17: #{tpu_custom_call.1} parent=1 // pred_fallthru
      _
    %v38 = vld [vmem:[#allocation5] sm:$0xf]
    %vm39 = vcmask 60416
    %v40 = vsel %vm39, %v38, 0.0
    %41 = vadd.xlane.f32.xlu0 %v40
    %v42 = vpop.xlane.xlu0 %41
    %v43 = vmax.f32 %v42, 1e-09
    %v44 = vrcp.pop %v43
    %v45 = vmul.f32 %v38, %v44
    %v46 = vld [vmem:[#allocation2] sm:$0xff]
    %v47 = vld [vmem:[#allocation2 + $0x8] sm:$0xff]
    %v48 = vld [vmem:[#allocation2 + $0x10] sm:$0xff]
    %v49 = vld [vmem:[#allocation2 + $0x18] sm:$0xff]
    %v50 = vlaneseq
    %v51 = vshrl.u32 %v50, 7
    %v52 = vsub.s32 0, %v51
    %v53 = vrot.slane %v45, %v52
    %55 = vbcast.lane.b32.xlu0 %v53, 256
    %v56 = vpop.permute.xlu0 %55
    %v57 = vlaneseq
    %v58 = vshrl.u32 %v57, 7
    %v59 = vsub.s32 1, %v58
    %v60 = vrot.slane %v45, %v59
    %62 = vbcast.lane.b32.xlu0 %v60, 256
    %v63 = vpop.permute.xlu0 %62
    %v64 = vlaneseq
    %v65 = vshrl.u32 %v64, 7
    %v66 = vsub.s32 2, %v65
    %v67 = vrot.slane %v45, %v66
    %69 = vbcast.lane.b32.xlu0 %v67, 256
    %v70 = vpop.permute.xlu0 %69
    %v71 = vlaneseq
    %v72 = vshrl.u32 %v71, 7
    %v73 = vsub.s32 3, %v72
    %v74 = vrot.slane %v45, %v73
    %76 = vbcast.lane.b32.xlu0 %v74, 256
    %v77 = vpop.permute.xlu0 %76
    %v78 = vmul.f32 %v46, %v56
    %v79 = vmul.f32 %v47, %v63
    %v80 = vmul.f32 %v48, %v70
    %v81 = vmul.f32 %v49, %v77
    %vm82 = vcmask 261120
    %v83 = vsel %vm82, %v78, 0.0
    %v84 = vrot.slane %v83, 4
    %v85 = vadd.f32 %v83, %v84
    %v86 = vrot.slane %v85, 2
    %v87 = vadd.f32 %v85, %v86
    %v88 = vrot.slane %v87, 1
    %v89 = vadd.f32 %v87, %v88
    %v90 = vsel %vm82, %v79, 0.0
    %v91 = vrot.slane %v90, 4
    %v92 = vadd.f32 %v90, %v91
    %v93 = vrot.slane %v92, 2
    %v94 = vadd.f32 %v92, %v93
    %v95 = vrot.slane %v94, 1
    %v96 = vadd.f32 %v94, %v95
    %v97 = vsel %vm82, %v80, 0.0
    %v98 = vrot.slane %v97, 4
    %v99 = vadd.f32 %v97, %v98
    %v100 = vrot.slane %v99, 2
    %v101 = vadd.f32 %v99, %v100
    %v102 = vrot.slane %v101, 1
    %v103 = vadd.f32 %v101, %v102
    %v104 = vsel %vm82, %v81, 0.0
    %v105 = vrot.slane %v104, 4
    %v106 = vadd.f32 %v104, %v105
    %v107 = vrot.slane %v106, 2
    %v108 = vadd.f32 %v106, %v107
    %v109 = vrot.slane %v108, 1
    %v110 = vadd.f32 %v108, %v109
    %v111 = vmul.f32 %v89, %v89
    %v112 = vmul.f32 %v96, %v96
    %v113 = vmul.f32 %v103, %v103
    %v114 = vmul.f32 %v110, %v110
    %vm119 = vcmask 1041409
    %v120 = vsel %vm119, %v112, %v111
    %vm121 = vcmask 1042434
    %v122 = vsel %vm121, %v113, %v120
    %vm123 = vcmask 1043459
    %v124 = vsel %vm123, %v114, %v122
    %vm126 = vcmask 257024
    %v127 = vsel %vm126, %v124, 0.0
    %128 = vadd.xlane.f32.xlu0 %v127
    %v129 = vpop.xlane.xlu0 %128
    %v130 = vmax.f32 %v129, 1e-24
    %v131 = vrsqrt.pop %v130
    %v133 = vrot.slane %v131, 1
    %v134 = vrot.slane %v131, 2
    %v135 = vrot.slane %v131, 3
    %v140 = vmul.f32 %v89, %v131
    %v141 = vmul.f32 %v96, %v133
    %v142 = vmul.f32 %v103, %v134
    %v143 = vmul.f32 %v110, %v135
    %v144 = vpack.c.bf16 %v140, %v140
    %v145 = vpack.c.bf16 %v141, %v141
    %v146 = vpack.c.bf16 %v142, %v142
    %v147 = vpack.c.bf16 %v143, %v143
    %v153 = vunpack.c.l.s4 1983009808
    %v154 = vunpack.c.0.s8 %v153
    %v155 = vlaneseq
    %v156 = vshrl.u32 %v155, 7
    %v157 = vsub.s32 %v154, %v156
    %v158 = vrot.slane %v144, %v157
    %v160 = vunpack.c.l.s4 1983009808
    %v161 = vunpack.c.0.s8 %v160
    %v162 = vlaneseq
    %v163 = vshrl.u32 %v162, 7
    %v164 = vsub.s32 %v161, %v163
    %v165 = vrot.slane %v145, %v164
    %v167 = vunpack.c.l.s4 1983009808
    %v168 = vunpack.c.0.s8 %v167
    %v169 = vlaneseq
    %v170 = vshrl.u32 %v169, 7
    %v171 = vsub.s32 %v168, %v170
    %v172 = vrot.slane %v146, %v171
    %v174 = vunpack.c.l.s4 1983009808
    %v175 = vunpack.c.0.s8 %v174
    %v176 = vlaneseq
    %v177 = vshrl.u32 %v176, 7
    %v178 = vsub.s32 %v175, %v177
    %v179 = vrot.slane %v147, %v178
    %v181 = vunpack.c.l.s4 1983009808
    %v182 = vunpack.c.0.s8 %v181
    %v183 = vlaneseq
    %v184 = vshrl.u32 %v183, 7
    %v185 = vsub.s32 %v182, %v184
    %v186 = vrot.slane %v158, %v185
    %v188 = vunpack.c.l.s4 1983009808
    %v189 = vunpack.c.0.s8 %v188
    %v190 = vlaneseq
    %v191 = vshrl.u32 %v190, 7
    %v192 = vsub.s32 %v189, %v191
    %v193 = vrot.slane %v165, %v192
    %v195 = vunpack.c.l.s4 1983009808
    %v196 = vunpack.c.0.s8 %v195
    %v197 = vlaneseq
    %v198 = vshrl.u32 %v197, 7
    %v199 = vsub.s32 %v196, %v198
    %v200 = vrot.slane %v172, %v199
    %v202 = vunpack.c.l.s4 1983009808
    %v203 = vunpack.c.0.s8 %v202
    %v204 = vlaneseq
    %v205 = vshrl.u32 %v204, 7
    %v206 = vsub.s32 %v203, %v205
    %v207 = vrot.slane %v179, %v206
    %v208 = vunpack.c.l.b16 %v186
    %v209 = vunpack.c.l.b16 %v193
    %v210 = vunpack.c.l.b16 %v200
    %v211 = vunpack.c.l.b16 %v207
    %v212 = vrot.slane %v209, 7
    %v213 = vsel %vm119, %v212, %v208
    %v214 = vrot.slane %v210, 6
    %v215 = vsel %vm121, %v214, %v213
    %v216 = vrot.slane %v211, 5
    %v217 = vsel %vm123, %v216, %v215
    %v218 = vpack.c.b16 %v217, %v217
    %v220 = vunpack.c.l.s4 1983009808
    %v221 = vunpack.c.0.s8 %v220
    %v222 = vlaneseq
    %v223 = vshrl.u32 %v222, 7
    %v224 = vsub.s32 %v221, %v223
    %v225 = vrot.slane %v218, %v224
    %vm227 = vcmask 254976
    %228 = vst.msk [vmem:[#allocation7] sm:$0x3] %vm227, %v225
    // Predicated region
    $region18: #{tpu_custom_call.1} parent=1 // pred_check
      _
    $region19: #{tpu_custom_call.1} parent=1 // pred_check_branch
      %230 = sbr.rel (0) target = $region21
    $region20: #{tpu_custom_call.1} parent=1 // pred_region
      %s232 = ssub.s32 32, 32
      %233 = vsyncadd [#allocation4], %s232
      %s235 = sshll.u32 [#allocation7], 4
      %s236 = int_to_ptr.vmem [resolvable:$true] %s235
      %238 = dma.vmem_to_hbm [thread:$0]  %s236, 32, %s2, [#allocation4]
    $region21: #{tpu_custom_call.1} parent=1 // pred_fallthru
      _
    // Predicated region
    $region22: #{tpu_custom_call.1} parent=1 // pred_check
      _
    $region23: #{tpu_custom_call.1} parent=1 // pred_check_branch
      %240 = sbr.rel (0) target = $region25
    $region24: #{tpu_custom_call.1} parent=1 // pred_region
      %241 = dma.done [#allocation4], 32
    $region25: #{tpu_custom_call.1} parent=1 // pred_fallthru
      _
    %242 = vsyncpa [#allocation3], 1
    %243 = vsyncpa [#allocation6], 1
    %244 = vsyncpa [#allocation4], 1

</llo_original>
